<compile_context>
chip_gen: v5e
topology: v5e:2x2
jax: 0.10.0
libtpu: 0.0.40
codegen_flags: <defaults>
</compile_context>

<pallas_src>
import math
import inspect
import functools

import jax
import jax.numpy as jnp
from jax import lax
from jax.experimental import pallas as pl
from jax.experimental.pallas import tpu as pltpu


def _round_up(a, b):
    return ((a + b - 1) // b) * b


def _supports_single_buffer():
    if not hasattr(pl, "Buffered"):
        return False
    try:
        return "pipeline_mode" in inspect.signature(pl.BlockSpec).parameters
    except (TypeError, ValueError):
        return False


_HAS_PIPELINE_MODE = _supports_single_buffer()


def _vmem_capacity_bytes():
    """Physical VMEM of the attached TPU; conservative default off-TPU."""
    try:
        if jax.default_backend() == "tpu":
            return int(pltpu.get_tpu_info().vmem_capacity_bytes)
    except Exception:  # hardware introspection only; never hides kernel errors
        pass
    return 64 << 20  # v7x-sized conservative default


def _gelu_exact(x):
    # nn.GELU() default = exact erf formulation (torch parity).
    return 0.5 * x * (1.0 + lax.erf(x * jnp.float32(0.7071067811865476)))


def _gelu_tanh(x):
    # tanh approximation: runs in the otherwise-idle EUP slot (fast path).
    c = jnp.float32(0.7978845608028654)  # sqrt(2/pi)
    return 0.5 * x * (1.0 + jnp.tanh(c * (x + jnp.float32(0.044715) * x * x * x)))


def _vmem_estimate(tm, th, in_dim, out_dim, csz, osz, w_buf, o_buf, dropout):
    est = 2 * tm * in_dim * csz                         # x tile (double buffered)
    est += w_buf * (in_dim * th + th * out_dim) * csz   # W1 / W2 tiles
    est += w_buf * (th + out_dim) * 4                   # biases (f32)
    est += o_buf * tm * out_dim * osz                   # output tile
    est += tm * out_dim * 4                             # f32 accumulator scratch
    est += 3 * tm * th * 4                              # f32 hidden + GELU temps + cast copy
    if dropout:
        est += 2 * tm * th * csz                        # mask tile (double buffered)
    return est


def mlp_kernel(*refs, apply_dropout, approximate_gelu):
    if apply_dropout:
        x_ref, w1_ref, b1_ref, w2_ref, b2_ref, mask_ref, o_ref, acc_ref = refs
    else:
        x_ref, w1_ref, b1_ref, w2_ref, b2_ref, o_ref, acc_ref = refs
        mask_ref = None

    k = pl.program_id(1)

    @pl.when(k == 0)
    def _():
        acc_ref[...] = jnp.zeros_like(acc_ref)

    # ---- Linear 1 (MXU, f32 accumulation) + bias + GELU (f32 elementwise) ----
    h = jnp.dot(x_ref[...], w1_ref[...], preferred_element_type=jnp.float32)
    h = h + b1_ref[...]                                # (tm, th) + (1, th)
    h = _gelu_tanh(h) if approximate_gelu else _gelu_exact(h)

    # ---- Dropout (training only): pre-scaled keep mask (0 or 1/(1-p)) ----
    if apply_dropout:
        h = h * mask_ref[...].astype(jnp.float32)

    # ---- Linear 2 partial product, accumulated over hidden tiles (MXU) ----
    acc_ref[...] += jnp.dot(h.astype(w2_ref.dtype), w2_ref[...],
                            preferred_element_type=jnp.float32)

    @pl.when(k == pl.num_programs(1) - 1)
    def _():
        o_ref[...] = (acc_ref[...] + b2_ref[...]).astype(o_ref.dtype)


def mlp_pallas(x, w1, b1, w2, b2, *, dropout_prob=0.1, training=False,
               rng_key=None, tm=None, th=None,
               compute_dtype=jnp.bfloat16, approximate_gelu=False):
    """x: (..., in_dim) -> (..., out_dim).  Weights are (in, out) layout.

    compute_dtype: MXU input dtype (bf16 default; accumulation + elementwise f32).
    approximate_gelu: tanh GELU (EUP fast path); False = exact erf (torch parity).
    """
    in_dim = x.shape[-1]
    hidden = w1.shape[1]
    out_dim = w2.shape[1]
    lead = x.shape[:-1]
    m = int(math.prod(lead)) if lead else 1
    out_dtype = x.dtype
    compute_dtype = jnp.dtype(compute_dtype)
    csz = compute_dtype.itemsize
    osz = jnp.dtype(out_dtype).itemsize

    apply_dropout = bool(training) and float(dropout_prob) > 0.0
    p = float(dropout_prob)

    # ---- per-generation VMEM budget (v5e/v6e: 128 MiB, v7x: 64 MiB per TC) ----
    phys = _vmem_capacity_bytes()
    budget = int(min(phys * 3 // 4, 100 << 20))        # ~96 MiB v5e/v6e, ~48 MiB v7x
    is_small_vmem = phys <= (64 << 20)                 # v7x-like: 2 TCs, 64 MiB

    sub = 16 if compute_dtype == jnp.dtype(jnp.bfloat16) else 8
    wbuf_const = 1 if _HAS_PIPELINE_MODE else 2        # single-buffer constant blocks

    # ---- hidden (reduction) tile: keep full hidden resident when it fits ----
    if th is not None and th < hidden and hidden % th == 0 and th % 128 == 0:
        th_eff = th
    else:
        full_w = wbuf_const * (in_dim * hidden + hidden * out_dim) * csz
        if hidden % 128 != 0 or full_w <= budget // 2:
            th_eff = hidden                            # both weight slabs resident
        elif is_small_vmem and hidden % 256 == 0:
            th_eff = 256                               # v7x: small th, spend VMEM on tm
        else:
            th_eff = 512 if hidden % 512 == 0 else (256 if hidden % 256 == 0 else 128)
    kt = hidden // th_eff

    w_nbuf = wbuf_const if kt == 1 else 2              # weight blocks move only if kt > 1
    o_nbuf = 1 if (kt > 1 and _HAS_PIPELINE_MODE) else 2  # output written only at k==last

    # ---- row tile: as big as the VMEM budget allows ----
    tm_cap = tm if tm is not None else (512 if phys >= (96 << 20) else 256)
    tm_eff = max(sub, min(_round_up(tm_cap, sub), _round_up(m, sub)))
    while tm_eff > sub and _vmem_estimate(tm_eff, th_eff, in_dim, out_dim, csz, osz,
                                          w_nbuf, o_nbuf, apply_dropout) > budget:
        tm_eff = max(sub, _round_up(tm_eff // 2, sub))
    if is_small_vmem and m > sub:
        # v7x megacore: keep >= 2 row tiles so both TensorCores get work.
        tm_eff = min(tm_eff, max(sub, _round_up(pl.cdiv(m, 2), sub)))

    x2 = x.reshape(m, in_dim).astype(compute_dtype)
    m_rows = m
    if m < tm_eff:                                     # tiny inputs only: pad one tile
        x2 = jnp.pad(x2, ((0, tm_eff - m), (0, 0)))
        m_rows = tm_eff
    # NOTE: a ragged last row tile relies on Pallas OOB-masked stores — rows are
    # independent and OOB output rows are never written back, so no full pad.
    mt = pl.cdiv(m_rows, tm_eff)

    w1c = w1.astype(compute_dtype)
    w2c = w2.astype(compute_dtype)
    b1_2d = b1.reshape(1, hidden).astype(jnp.float32)
    b2_2d = b2.reshape(1, out_dim).astype(jnp.float32)

    inputs = [x2, w1c, b1_2d, w2c, b2_2d]
    if apply_dropout:
        # TODO(synk): mask comes from host-side jax.random (statistically, not
        # bitwise, equivalent to torch's RNG).  An in-kernel pltpu.prng_seed /
        # prng_random_bits stream would avoid the extra HBM read, but that
        # primitive has no CPU/interpret lowering.
        if rng_key is None:
            rng_key = jax.random.PRNGKey(0)
        keep = jax.random.bernoulli(rng_key, 1.0 - p, (m_rows, hidden))
        mask = keep.astype(compute_dtype) * jnp.asarray(1.0 / (1.0 - p), compute_dtype)
        inputs.append(mask)

    est = _vmem_estimate(tm_eff, th_eff, in_dim, out_dim, csz, osz,
                         w_nbuf, o_nbuf, apply_dropout)
    vmem_limit = int(min(max(est + (4 << 20), 32 << 20), budget))

    def spec(shape, index_map, nbuf):
        if _HAS_PIPELINE_MODE and nbuf != 2:
            return pl.BlockSpec(shape, index_map, pipeline_mode=pl.Buffered(nbuf))
        return pl.BlockSpec(shape, index_map)

    in_specs = [
        spec((tm_eff, in_dim),  lambda i, k: (i, 0), 2),
        spec((in_dim, th_eff),  lambda i, k: (0, k), w_nbuf),
        spec((1, th_eff),       lambda i, k: (0, k), w_nbuf),
        spec((th_eff, out_dim), lambda i, k: (k, 0), w_nbuf),
        spec((1, out_dim),      lambda i, k: (0, 0), wbuf_const),
    ]
    if apply_dropout:
        in_specs.append(spec((tm_eff, th_eff), lambda i, k: (i, k), 2))

    grid_spec = pltpu.PrefetchScalarGridSpec(
        num_scalar_prefetch=0,
        grid=(mt, kt),                                 # (row tiles, hidden tiles)
        in_specs=in_specs,
        out_specs=spec((tm_eff, out_dim), lambda i, k: (i, 0), o_nbuf),
        scratch_shapes=[pltpu.VMEM((tm_eff, out_dim), jnp.float32)],
    )

    kernel = functools.partial(mlp_kernel, apply_dropout=apply_dropout,
                               approximate_gelu=bool(approximate_gelu))
    out = pl.pallas_call(
        kernel,
        out_shape=jax.ShapeDtypeStruct((m_rows, out_dim), out_dtype),
        grid_spec=grid_spec,
        compiler_params=pltpu.CompilerParams(
            dimension_semantics=("parallel", "arbitrary"),
            vmem_limit_bytes=vmem_limit),
    )(*inputs)

    if m_rows != m:
        out = out[:m]
    return out.reshape(*lead, out_dim)


def init_mlp_params(key, in_dim, out_dim, dtype=jnp.float32):
    """Deterministic init matching PyTorch nn.Linear's U(-1/sqrt(fan_in), ...)."""
    hidden = out_dim // 2
    k1, k2, k3, k4 = jax.random.split(key, 4)
    bound1 = 1.0 / math.sqrt(in_dim)
    bound2 = 1.0 / math.sqrt(hidden)
    # stored as (in_features, out_features) for x @ W
    w1 = jax.random.uniform(k1, (in_dim, hidden), dtype, -bound1, bound1)
    b1 = jax.random.uniform(k2, (hidden,), dtype, -bound1, bound1)
    w2 = jax.random.uniform(k3, (hidden, out_dim), dtype, -bound2, bound2)
    b2 = jax.random.uniform(k4, (out_dim,), dtype, -bound2, bound2)
    return w1, b1, w2, b2


if __name__ == "__main__":
    key = jax.random.PRNGKey(0)
    kx, kp, kd = jax.random.split(key, 3)

    # Small but lane-aligned shapes: feature dims are multiples of 128.
    batch, seq, in_dim, out_dim = 2, 64, 128, 256      # hidden = 128
    x = jax.random.normal(kx, (batch, seq, in_dim), dtype=jnp.float32)
    w1, b1, w2, b2 = init_mlp_params(kp, in_dim, out_dim)

    # Pure-JAX reference (f32, exact GELU, eval mode / no dropout).
    h_ref = jax.nn.gelu(
        jnp.dot(x, w1, precision=lax.Precision.HIGHEST) + b1, approximate=False)
    y_ref = jnp.dot(h_ref, w2, precision=lax.Precision.HIGHEST) + b2

    # --- eval mode, f32 MXU inputs: tight numerical check ---
    y_f32 = mlp_pallas(x, w1, b1, w2, b2, dropout_prob=0.1, training=False,
                       compute_dtype=jnp.float32)
    y_f32 = jax.block_until_ready(y_f32)
    assert y_f32.shape == (batch, seq, out_dim)
    err_f32 = float(jnp.max(jnp.abs(y_f32 - y_ref)))
    assert jnp.allclose(y_f32, y_ref, atol=1e-3, rtol=1e-3), err_f32

    # --- eval mode, default bf16 MXU inputs (f32 accumulation): loose check ---
    y_bf = mlp_pallas(x, w1, b1, w2, b2, dropout_prob=0.1, training=False)
    y_bf = jax.block_until_ready(y_bf).astype(jnp.float32)
    err_bf = float(jnp.max(jnp.abs(y_bf - y_ref)))
    assert jnp.allclose(y_bf, y_ref, atol=1.5e-1, rtol=1e-1), err_bf

    # --- training mode: host-side dropout mask, bf16 matmuls ---
    y_tr = mlp_pallas(x, w1, b1, w2, b2, dropout_prob=0.1, training=True,
                      rng_key=kd)
    y_tr = jax.block_until_ready(y_tr).astype(jnp.float32)
    assert y_tr.shape == (batch, seq, out_dim)
    assert bool(jnp.all(jnp.isfinite(y_tr)))
    # dropout actually perturbed the output
    assert float(jnp.max(jnp.abs(y_tr - y_ref))) > 1e-2

    print("KERNEL_OK")
</pallas_src>

<mosaic_0001>
module attributes {stable_mosaic.version = 11 : i64} {
  func.func @mlp_kernel(%arg0: i32, %arg1: i32, %arg2: memref<64x128xf32, #tpu.memory_space<vmem>>, %arg3: memref<128x128xf32, #tpu.memory_space<vmem>>, %arg4: memref<1x128xf32, #tpu.memory_space<vmem>>, %arg5: memref<128x256xf32, #tpu.memory_space<vmem>>, %arg6: memref<1x256xf32, #tpu.memory_space<vmem>>, %arg7: memref<64x256xf32, #tpu.memory_space<vmem>>, %arg8: memref<64x256xf32, #tpu.memory_space<vmem>>) attributes {dimension_semantics = [#tpu.dimension_semantics<parallel>, #tpu.dimension_semantics<arbitrary>], iteration_bounds = array<i64: 2, 1>, scalar_prefetch = 0 : i64, scratch_operands = 1 : i64, tpu.core_type = #tpu.core_type<tc>, window_params = [{transform_indices = @transform_0, window_bounds = array<i64: 64, 128>}, {pipeline_mode = #tpu.pipeline_mode<synchronous>, transform_indices = @transform_1, window_bounds = array<i64: 128, 128>}, {pipeline_mode = #tpu.pipeline_mode<synchronous>, transform_indices = @transform_2, window_bounds = array<i64: 1, 128>}, {pipeline_mode = #tpu.pipeline_mode<synchronous>, transform_indices = @transform_3, window_bounds = array<i64: 128, 256>}, {pipeline_mode = #tpu.pipeline_mode<synchronous>, transform_indices = @transform_4, window_bounds = array<i64: 1, 256>}, {transform_indices = @transform_5, window_bounds = array<i64: 64, 256>}]} {
    %c0_i32 = arith.constant 0 : i32
    %0 = arith.cmpi eq, %arg1, %c0_i32 : i32
    %1 = arith.extui %0 : i1 to i32
    %c0_i32_0 = arith.constant 0 : i32
    %2 = arith.cmpi ne, %1, %c0_i32_0 : i32
    scf.if %2 {
      %cst_18 = arith.constant 0.000000e+00 : f32
      %25 = vector.broadcast %cst_18 : f32 to vector<64x256xf32>
      %c0_19 = arith.constant 0 : index
      %c0_20 = arith.constant 0 : index
      %26 = vector.load %arg8[%c0_19, %c0_20] : memref<64x256xf32, #tpu.memory_space<vmem>>, vector<64x256xf32>
      tpu.vector_store %arg8[%c0_19, %c0_20], %25 {strides = array<i32>} : memref<64x256xf32, #tpu.memory_space<vmem>>, vector<64x256xf32>,
    } else {
    }
    %c0 = arith.constant 0 : index
    %c0_1 = arith.constant 0 : index
    %3 = vector.load %arg2[%c0, %c0_1] : memref<64x128xf32, #tpu.memory_space<vmem>>, vector<64x128xf32>
    %c0_2 = arith.constant 0 : index
    %c0_3 = arith.constant 0 : index
    %4 = vector.load %arg3[%c0_2, %c0_3] : memref<128x128xf32, #tpu.memory_space<vmem>>, vector<128x128xf32>
    %cst = arith.constant dense<0.000000e+00> : vector<64x128xf32>
    %5 = tpu.matmul %3, %4, %cst {dimension_numbers = #tpu.dot_dimension_numbers<[1], [0], [0], [1], [0, 0, 1, 1], [], []>} : vector<64x128xf32>, vector<128x128xf32>, vector<64x128xf32> -> vector<64x128xf32>
    %c0_4 = arith.constant 0 : index
    %c0_5 = arith.constant 0 : index
    %6 = vector.load %arg4[%c0_4, %c0_5] : memref<1x128xf32, #tpu.memory_space<vmem>>, vector<1x128xf32>
    %7 = vector.broadcast %6 : vector<1x128xf32> to vector<64x128xf32>
    %8 = arith.addf %5, %7 : vector<64x128xf32>
    %cst_6 = arith.constant 5.000000e-01 : f32
    %9 = vector.broadcast %cst_6 : f32 to vector<64x128xf32>
    %10 = arith.mulf %9, %8 : vector<64x128xf32>
    %cst_7 = arith.constant 0.707106769 : f32
    %11 = vector.broadcast %cst_7 : f32 to vector<64x128xf32>
    %12 = arith.mulf %8, %11 : vector<64x128xf32>
    %13 = math.erf %12 : vector<64x128xf32>
    %cst_8 = arith.constant 1.000000e+00 : f32
    %14 = vector.broadcast %cst_8 : f32 to vector<64x128xf32>
    %15 = arith.addf %14, %13 : vector<64x128xf32>
    %16 = arith.mulf %10, %15 : vector<64x128xf32>
    %c0_9 = arith.constant 0 : index
    %c0_10 = arith.constant 0 : index
    %17 = vector.load %arg8[%c0_9, %c0_10] : memref<64x256xf32, #tpu.memory_space<vmem>>, vector<64x256xf32>
    %c0_11 = arith.constant 0 : index
    %c0_12 = arith.constant 0 : index
    %18 = vector.load %arg5[%c0_11, %c0_12] : memref<128x256xf32, #tpu.memory_space<vmem>>, vector<128x256xf32>
    %cst_13 = arith.constant dense<0.000000e+00> : vector<64x256xf32>
    %19 = tpu.matmul %16, %18, %cst_13 {dimension_numbers = #tpu.dot_dimension_numbers<[1], [0], [0], [1], [0, 0, 1, 1], [], []>} : vector<64x128xf32>, vector<128x256xf32>, vector<64x256xf32> -> vector<64x256xf32>
    %20 = arith.addf %17, %19 : vector<64x256xf32>
    %c0_14 = arith.constant 0 : index
    %c0_15 = arith.constant 0 : index
    %21 = vector.load %arg8[%c0_14, %c0_15] : memref<64x256xf32, #tpu.memory_space<vmem>>, vector<64x256xf32>
    tpu.vector_store %arg8[%c0_14, %c0_15], %20 {strides = array<i32>} : memref<64x256xf32, #tpu.memory_space<vmem>>, vector<64x256xf32>,
    %c0_i32_16 = arith.constant 0 : i32
    %22 = arith.cmpi eq, %arg1, %c0_i32_16 : i32
    %23 = arith.extui %22 : i1 to i32
    %c0_i32_17 = arith.constant 0 : i32
    %24 = arith.cmpi ne, %23, %c0_i32_17 : i32
    scf.if %24 {
      %c0_18 = arith.constant 0 : index
      %c0_19 = arith.constant 0 : index
      %25 = vector.load %arg8[%c0_18, %c0_19] : memref<64x256xf32, #tpu.memory_space<vmem>>, vector<64x256xf32>
      %c0_20 = arith.constant 0 : index
      %c0_21 = arith.constant 0 : index
      %26 = vector.load %arg6[%c0_20, %c0_21] : memref<1x256xf32, #tpu.memory_space<vmem>>, vector<1x256xf32>
      %27 = vector.broadcast %26 : vector<1x256xf32> to vector<64x256xf32>
      %28 = arith.addf %25, %27 : vector<64x256xf32>
      %c0_22 = arith.constant 0 : index
      %c0_23 = arith.constant 0 : index
      %29 = vector.load %arg7[%c0_22, %c0_23] : memref<64x256xf32, #tpu.memory_space<vmem>>, vector<64x256xf32>
      tpu.vector_store %arg7[%c0_22, %c0_23], %28 {strides = array<i32>} : memref<64x256xf32, #tpu.memory_space<vmem>>, vector<64x256xf32>,
    } else {
    }
    return
  }
  func.func @transform_0(%arg0: i32, %arg1: i32) -> (i32, i32) {
    %c0_i32 = arith.constant 0 : i32
    %c0_i32_0 = arith.constant 0 : i32
    return %arg0, %c0_i32 : i32, i32
  }
  func.func @transform_1(%arg0: i32, %arg1: i32) -> (i32, i32) {
    %c0_i32 = arith.constant 0 : i32
    %c0_i32_0 = arith.constant 0 : i32
    return %c0_i32, %arg1 : i32, i32
  }
  func.func @transform_2(%arg0: i32, %arg1: i32) -> (i32, i32) {
    %c0_i32 = arith.constant 0 : i32
    %c0_i32_0 = arith.constant 0 : i32
    return %c0_i32, %arg1 : i32, i32
  }
  func.func @transform_3(%arg0: i32, %arg1: i32) -> (i32, i32) {
    %c0_i32 = arith.constant 0 : i32
    %c0_i32_0 = arith.constant 0 : i32
    return %arg1, %c0_i32 : i32, i32
  }
  func.func @transform_4(%arg0: i32, %arg1: i32) -> (i32, i32) {
    %c0_i32 = arith.constant 0 : i32
    %c0_i32_0 = arith.constant 0 : i32
    %c0_i32_1 = arith.constant 0 : i32
    return %c0_i32, %c0_i32_0 : i32, i32
  }
  func.func @transform_5(%arg0: i32, %arg1: i32) -> (i32, i32) {
    %c0_i32 = arith.constant 0 : i32
    %c0_i32_0 = arith.constant 0 : i32
    return %arg0, %c0_i32 : i32, i32
  }
}

</mosaic_0001>

<llo_original>
// kernel: tpu_custom_call.1
$region0: #{tpu_custom_call.1}
  #allocation0 [shape = 'u32[]', space=smem, size = 0x4, offset = 0x4, fixed_abs, tag = 'smem constant byte address 0x4 - core index']
  #allocation1 [shape = 'u32[72,128]{1,0:T(1,128)}', space=vmem, size = 0x9000, scoped, tag = 'internal scratch']
  #allocation2 [shape = 'f32[64,256]{1,0:T(8,128)}', space=vmem, size = 0x10000, scoped, tag = 'scratch operand']
  %s0 = inlined_call_operand.hbm [shape: f32[128,128], index: 0, kind: input, shape index: {}]
  %s1 = inlined_call_operand.hbm [shape: f32[128,128], index: 1, kind: input, shape index: {}]
  %s2 = inlined_call_operand.vmem [shape: f32[1,128], index: 2, kind: input, shape index: {}]
  %s3 = inlined_call_operand.hbm [shape: f32[128,256], index: 3, kind: input, shape index: {}]
  %s4 = inlined_call_operand.vmem [shape: f32[1,256], index: 4, kind: input, shape index: {}]
  %s5 = inlined_call_operand.hbm [shape: f32[128,256], index: 5, kind: output, shape index: {}]
  %s6 = sld [smem:[#allocation0]]
  $region73: #{tpu_custom_call.1} parent=0
    _
  %s8 = ssub.s32 1, %s6
  %s9 = scalar_select 0, %s8, %s6
  $region1: #{tpu_custom_call.1} parent=0
    #allocation3 [shape = 'u8[65536]{0}', space=vmem, size = 0x10000, scoped, tag = 'input window, operand 0']
    #allocation4 [shape = 's32[2]{0}', space=sflag, size = 0x8, scoped, tag = 'scoped memory for tpu_custom_call.1']
    #allocation5 [shape = 's32[2]{0}', space=sflag, size = 0x8, scoped, tag = 'scoped memory for tpu_custom_call.1']
    #allocation6 [shape = 'u8[65536]{0}', space=vmem, size = 0x10000, scoped, tag = 'input window, operand 1, single buffered']
    #allocation7 [shape = 's32[1]{0}', space=sflag, size = 0x4, scoped, tag = 'scoped memory for tpu_custom_call.1']
    #allocation8 [shape = 'u8[131072]{0}', space=vmem, size = 0x20000, scoped, tag = 'input window, operand 3, single buffered']
    #allocation9 [shape = 'u8[131072]{0}', space=vmem, size = 0x20000, scoped, tag = 'output window, operand 0']
    %10 = vsyncpa [#allocation4], 0
    %s11 = scalar_lea.sflag [#allocation4], 1
    %12 = vsyncpa %s11, 0
    %13 = vsyncpa [#allocation7], 0
    %14 = vsyncpa [#allocation5], 0
    %s15 = scalar_lea.sflag [#allocation5], 1
    %16 = vsyncpa %s15, 0
    loop: start=0, step=1, limit=4
    $region2: #{tpu_custom_call.1} parent=1 // loop_pre_header
      _
    $region3: #{tpu_custom_call.1} parent=1 // loop_header
      %s18 = sphi 0, %s22
      %p19 = scmp.ge.s32.totalorder %s18, 4
      %s25 = sphi 0, %s37
      %s26 = sphi 0, %s33
      %s27 = sphi 0, %s25
      %s28 = sphi 0, %s26
      %s29 = sphi 0, %s27
      %s30 = sphi 0, %s28
      %s40 = sphi 0, %s42
      %s43 = sphi 0, %s40
      %s44 = sphi 0, %s43
      %s60 = sphi 0, %s44
      %s66 = sphi 0, %s68
      %s69 = sphi 0, %s66
      %s70 = sphi 0, %s69
      %s86 = sphi 0, %s70
      %s92 = sphi 0, %s94
      %s95 = sphi 0, %s92
      %s96 = sphi 0, %s95
      %s112 = sphi 0, %s96
      %s118 = sphi 0, %s120
      %s121 = sphi 0, %s118
      %s122 = sphi 0, %s121
      %s138 = sphi 0, %s122
      %s142 = sphi 0, %s142
      %s144 = sphi 0, %s142
      %s145 = sphi 0, %s144
      %s159 = sphi 0, %s145
      %s165 = sphi 0, %s167
      %s168 = sphi 0, %s165
      %s169 = sphi 0, %s168
      %s185 = sphi 0, %s169
    $region4: #{tpu_custom_call.1} parent=1 // loop_header_branch
      %21 = sbr.rel (%p19) target = $region8
    $region5: #{tpu_custom_call.1} parent=1 // loop_body
      %s23 = ssub.s32 %s18, 1
      %s24 = ssub.s32 %s18, 2
      %s31 = sadd.s32 1, %s26
      %p32 = scmp.ge.s32.totalorder %s31, 1
      %s33 = scalar_select %p32, 0, %s31
      %s34 = sadd.s32 1, %s25
      %s35 = scalar_select %p32, %s34, %s25
      %p36 = scmp.ge.s32.totalorder %s35, 2
      %s37 = scalar_select %p36, 0, %s35
      %s38 = ssub.s32 %s25, %s37
      %p39 = scmp.eq.s32.totalorder %s38, 0
      %s41 = sadd.s32 %s40, 1
      %s42 = scalar_select %p39, %s40, %s41
      %p45 = pneg %p39
      %p46 = scmp.eq.s32.totalorder %s18, 1
      %p47 = por %p45, %p46
      %p48 = scmp.ne.s32.totalorder %s40, %s43
      %p49 = scmp.eq.s32.totalorder %s18, 0
      %p50 = por %p48, %p49
      %p51 = scmp.ne.s32.totalorder %s40, %s43
      %p52 = scmp.eq.s32.totalorder %s23, 1
      %p53 = por %p51, %p52
      %p54 = scmp.ne.s32.totalorder %s43, %s44
      %p55 = scmp.eq.s32.totalorder %s23, 0
      %p56 = por %p54, %p55
      %p57 = scmp.ne.s32.totalorder %s43, %s44
      %p58 = scmp.eq.s32.totalorder %s24, 1
      %p59 = por %p57, %p58
      %p61 = scmp.ne.s32.totalorder %s44, %s60
      %p62 = scmp.eq.s32.totalorder %s24, 0
      %p63 = por %p61, %p62
      %s64 = ssub.s32 %s26, %s33
      %p65 = scmp.eq.s32.totalorder %s64, 0
      %s67 = sadd.s32 %s66, 1
      %s68 = scalar_select %p65, %s66, %s67
      %p71 = pneg %p65
      %p72 = scmp.eq.s32.totalorder %s18, 1
      %p73 = por %p71, %p72
      %p74 = scmp.ne.s32.totalorder %s66, %s69
      %p75 = scmp.eq.s32.totalorder %s18, 0
      %p76 = por %p74, %p75
      %p77 = scmp.ne.s32.totalorder %s66, %s69
      %p78 = scmp.eq.s32.totalorder %s23, 1
      %p79 = por %p77, %p78
      %p80 = scmp.ne.s32.totalorder %s69, %s70
      %p81 = scmp.eq.s32.totalorder %s23, 0
      %p82 = por %p80, %p81
      %p83 = scmp.ne.s32.totalorder %s69, %s70
      %p84 = scmp.eq.s32.totalorder %s24, 1
      %p85 = por %p83, %p84
      %p87 = scmp.ne.s32.totalorder %s70, %s86
      %p88 = scmp.eq.s32.totalorder %s24, 0
      %p89 = por %p87, %p88
      %s90 = ssub.s32 %s26, %s33
      %p91 = scmp.eq.s32.totalorder %s90, 0
      %s93 = sadd.s32 %s92, 1
      %s94 = scalar_select %p91, %s92, %s93
      %p97 = pneg %p91
      %p98 = scmp.eq.s32.totalorder %s18, 1
      %p99 = por %p97, %p98
      %p100 = scmp.ne.s32.totalorder %s92, %s95
      %p101 = scmp.eq.s32.totalorder %s18, 0
      %p102 = por %p100, %p101
      %p103 = scmp.ne.s32.totalorder %s92, %s95
      %p104 = scmp.eq.s32.totalorder %s23, 1
      %p105 = por %p103, %p104
      %p106 = scmp.ne.s32.totalorder %s95, %s96
      %p107 = scmp.eq.s32.totalorder %s23, 0
      %p108 = por %p106, %p107
      %p109 = scmp.ne.s32.totalorder %s95, %s96
      %p110 = scmp.eq.s32.totalorder %s24, 1
      %p111 = por %p109, %p110
      %p113 = scmp.ne.s32.totalorder %s96, %s112
      %p114 = scmp.eq.s32.totalorder %s24, 0
      %p115 = por %p113, %p114
      %s116 = ssub.s32 %s26, %s33
      %p117 = scmp.eq.s32.totalorder %s116, 0
      %s119 = sadd.s32 %s118, 1
      %s120 = scalar_select %p117, %s118, %s119
      %p123 = pneg %p117
      %p124 = scmp.eq.s32.totalorder %s18, 1
      %p125 = por %p123, %p124
      %p126 = scmp.ne.s32.totalorder %s118, %s121
      %p127 = scmp.eq.s32.totalorder %s18, 0
      %p128 = por %p126, %p127
      %p129 = scmp.ne.s32.totalorder %s118, %s121
      %p130 = scmp.eq.s32.totalorder %s23, 1
      %p131 = por %p129, %p130
      %p132 = scmp.ne.s32.totalorder %s121, %s122
      %p133 = scmp.eq.s32.totalorder %s23, 0
      %p134 = por %p132, %p133
      %p135 = scmp.ne.s32.totalorder %s121, %s122
      %p136 = scmp.eq.s32.totalorder %s24, 1
      %p137 = por %p135, %p136
      %p139 = scmp.ne.s32.totalorder %s122, %s138
      %p140 = scmp.eq.s32.totalorder %s24, 0
      %p141 = por %p139, %p140
      %s143 = sadd.s32 %s142, 1
      %p146 = scmp.eq.s32.totalorder %s18, 1
      %p147 = scmp.ne.s32.totalorder %s142, %s144
      %p148 = scmp.eq.s32.totalorder %s18, 0
      %p149 = por %p147, %p148
      %p150 = scmp.ne.s32.totalorder %s142, %s144
      %p151 = scmp.eq.s32.totalorder %s23, 1
      %p152 = por %p150, %p151
      %p153 = scmp.ne.s32.totalorder %s144, %s145
      %p154 = scmp.eq.s32.totalorder %s23, 0
      %p155 = por %p153, %p154
      %p156 = scmp.ne.s32.totalorder %s144, %s145
      %p157 = scmp.eq.s32.totalorder %s24, 1
      %p158 = por %p156, %p157
      %p160 = scmp.ne.s32.totalorder %s145, %s159
      %p161 = scmp.eq.s32.totalorder %s24, 0
      %p162 = por %p160, %p161
      %s163 = ssub.s32 %s25, %s37
      %p164 = scmp.eq.s32.totalorder %s163, 0
      %s166 = sadd.s32 %s165, 1
      %s167 = scalar_select %p164, %s165, %s166
      %p170 = pneg %p164
      %p171 = scmp.eq.s32.totalorder %s18, 1
      %p172 = por %p170, %p171
      %p173 = scmp.ne.s32.totalorder %s165, %s168
      %p174 = scmp.eq.s32.totalorder %s18, 0
      %p175 = por %p173, %p174
      %p176 = scmp.ne.s32.totalorder %s165, %s168
      %p177 = scmp.eq.s32.totalorder %s23, 1
      %p178 = por %p176, %p177
      %p179 = scmp.ne.s32.totalorder %s168, %s169
      %p180 = scmp.eq.s32.totalorder %s23, 0
      %p181 = por %p179, %p180
      %p182 = scmp.ne.s32.totalorder %s168, %s169
      %p183 = scmp.eq.s32.totalorder %s24, 1
      %p184 = por %p182, %p183
      %p186 = scmp.ne.s32.totalorder %s169, %s185
      %p187 = scmp.eq.s32.totalorder %s24, 0
      %p188 = por %p186, %p187
      %p189 = scmp.le.s32.totalorder 1, %s18
      %p190 = scmp.lt.s32.totalorder %s18, 3
      %p191 = pnand %p189, %p190
      %p192 = pneg %p191
      // Predicated region
      $region9: #{tpu_custom_call.1} parent=5 // pred_check
        _
      $region10: #{tpu_custom_call.1} parent=5 // pred_check_branch
        %194 = sbr.rel (%p191) target = $region12
      $region11: #{tpu_custom_call.1} parent=5 // pred_region
        %s195 = ssub.s32 %s18, 1
        // Predicated region
        $region13: #{tpu_custom_call.1} parent=11 // pred_check
          %p196 = pneg %p82
        $region14: #{tpu_custom_call.1} parent=11 // pred_check_branch
          %198 = sbr.rel (%p196) target = $region16
        $region15: #{tpu_custom_call.1} parent=11 // pred_region
          %200 = vsyncadd [#allocation7], 0
          %s201 = smul.addr %s28, 8
          %s202 = scalar_lea.hbm %s1, %s201
          %s203 = sshll.u32 %s202, 4
          %s204 = int_to_ptr.hbm [resolvable:$true] %s203
          %s205 = sshll.u32 [#allocation6], 4
          %s206 = int_to_ptr.vmem [resolvable:$true] %s205
          %211 = dma.hbm_to_vmem [thread:$0]  %s204, 2048, %s206, [#allocation7], 128, 128, 8
        $region16: #{tpu_custom_call.1} parent=11 // pred_fallthru
          _
        // Predicated region
        $region17: #{tpu_custom_call.1} parent=11 // pred_check
          %p212 = pneg %p108
        $region18: #{tpu_custom_call.1} parent=11 // pred_check_branch
          %214 = sbr.rel (%p212) target = $region20
        $region19: #{tpu_custom_call.1} parent=11 // pred_region
          %p215 = scmp.lt.s32.totalorder %s28, 0
          %s216 = scalar_select %p215, %s28, 0
          %s217 = scalar_lea.vmem %s2, %s216
        $region20: #{tpu_custom_call.1} parent=11 // pred_fallthru
          _
        // Predicated region
        $region21: #{tpu_custom_call.1} parent=11 // pred_check
          %p218 = pneg %p134
        $region22: #{tpu_custom_call.1} parent=11 // pred_check_branch
          %220 = sbr.rel (%p218) target = $region24
        $region23: #{tpu_custom_call.1} parent=11 // pred_region
          %s221 = smul.u32 16, %s28
          %223 = vsyncadd [#allocation7], 0
          %s224 = smul.addr %s221, 2
          %s225 = smul.addr %s224, 8
          %s226 = scalar_lea.hbm %s3, %s225
          %s227 = sshll.u32 %s226, 4
          %s228 = int_to_ptr.hbm [resolvable:$true] %s227
          %s229 = sshll.u32 [#allocation8], 4
          %s230 = int_to_ptr.vmem [resolvable:$true] %s229
          %235 = dma.hbm_to_vmem [thread:$0]  %s228, 4096, %s230, [#allocation7], 256, 256, 16
        $region24: #{tpu_custom_call.1} parent=11 // pred_fallthru
          _
        // Predicated region
        $region25: #{tpu_custom_call.1} parent=11 // pred_check
          %p236 = pneg %p155
        $region26: #{tpu_custom_call.1} parent=11 // pred_check_branch
          %238 = sbr.rel (%p236) target = $region28
        $region27: #{tpu_custom_call.1} parent=11 // pred_region
          _
        $region28: #{tpu_custom_call.1} parent=11 // pred_fallthru
          _
      $region12: #{tpu_custom_call.1} parent=5 // pred_fallthru
        _
      %p239 = scmp.lt.s32.totalorder %s18, 2
      // Predicated region
      $region29: #{tpu_custom_call.1} parent=5 // pred_check
        %p240 = pneg %p239
      $region30: #{tpu_custom_call.1} parent=5 // pred_check_branch
        %242 = sbr.rel (%p240) target = $region32
      $region31: #{tpu_custom_call.1} parent=5 // pred_region
        // Predicated region
        $region33: #{tpu_custom_call.1} parent=31 // pred_check
          %p243 = pneg %p50
        $region34: #{tpu_custom_call.1} parent=31 // pred_check_branch
          %245 = sbr.rel (%p243) target = $region36
        $region35: #{tpu_custom_call.1} parent=31 // pred_region
          %s246 = sand.u32 %s40, 1
          %s247 = scalar_lea.sflag [#allocation4], %s246
          %s248 = sand.u32 %s40, 1
          %s249 = smul.addr %s248, 64
          %s250 = scalar_lea.vmem [#allocation3], %s249
          %s251 = smul.u32 8, %s25
          %253 = vsyncadd %s247, 0
          %s254 = smul.addr %s251, 8
          %s255 = scalar_lea.hbm %s0, %s254
          %s256 = sshll.u32 %s255, 4
          %s257 = int_to_ptr.hbm [resolvable:$true] %s256
          %s258 = sshll.u32 %s250, 4
          %s259 = int_to_ptr.vmem [resolvable:$true] %s258
          %264 = dma.hbm_to_vmem [thread:$0]  %s257, 1024, %s259, %s247, 128, 128, 8
        $region36: #{tpu_custom_call.1} parent=31 // pred_fallthru
          _
      $region32: #{tpu_custom_call.1} parent=5 // pred_fallthru
        _
      %p265 = scmp.le.s32.totalorder 1, %s18
      %p266 = scmp.lt.s32.totalorder %s18, 3
      %p267 = pnand %p265, %p266
      %p268 = pneg %p267
      // Predicated region
      $region37: #{tpu_custom_call.1} parent=5 // pred_check
        _
      $region38: #{tpu_custom_call.1} parent=5 // pred_check_branch
        %270 = sbr.rel (%p267) target = $region40
      $region39: #{tpu_custom_call.1} parent=5 // pred_region
        %s271 = ssub.s32 %s18, 1
        %s272 = sand.u32 %s43, 1
        %s273 = scalar_lea.sflag [#allocation4], %s272
        %s274 = sand.u32 %s43, 1
        %s275 = smul.addr %s274, 64
        %s276 = scalar_lea.vmem [#allocation3], %s275
        // Predicated region
        $region41: #{tpu_custom_call.1} parent=39 // pred_check
          %p277 = pneg %p56
        $region42: #{tpu_custom_call.1} parent=39 // pred_check_branch
          %279 = sbr.rel (%p277) target = $region44
        $region43: #{tpu_custom_call.1} parent=39 // pred_region
          %281 = dma.done %s273, 1024
        $region44: #{tpu_custom_call.1} parent=39 // pred_fallthru
          _
        // Predicated region
        $region45: #{tpu_custom_call.1} parent=39 // pred_check
          %p282 = pneg %p82
        $region46: #{tpu_custom_call.1} parent=39 // pred_check_branch
          %284 = sbr.rel (%p282) target = $region48
        $region47: #{tpu_custom_call.1} parent=39 // pred_region
          %286 = dma.done [#allocation7], 2048
        $region48: #{tpu_custom_call.1} parent=39 // pred_fallthru
          _
        // Predicated region
        $region49: #{tpu_custom_call.1} parent=39 // pred_check
          %p287 = pneg %p134
        $region50: #{tpu_custom_call.1} parent=39 // pred_check_branch
          %289 = sbr.rel (%p287) target = $region52
        $region51: #{tpu_custom_call.1} parent=39 // pred_region
          %291 = dma.done [#allocation7], 4096
        $region52: #{tpu_custom_call.1} parent=39 // pred_fallthru
          _
        %s292 = sand.u32 %s43, 1
        %s293 = scalar_lea.sflag [#allocation4], %s292
        %s294 = sand.u32 %s43, 1
        %s295 = smul.addr %s294, 64
        %s296 = scalar_lea.vmem [#allocation3], %s295
        %p297 = pneg %p56
        %p298 = pneg %p53
        %p299 = pneg %p82
        %p300 = pneg %p79
        %p301 = scmp.lt.s32.totalorder %s28, 0
        %s302 = scalar_select %p301, %s28, 0
        %s303 = scalar_lea.vmem %s2, %s302
        %p304 = pneg %p108
        %p305 = pneg %p105
        %p306 = pneg %p134
        %p307 = pneg %p131
        %p308 = pneg %p155
        %p309 = pneg %p152
        %p310 = pneg %p181
        %p311 = pneg %p178
        %s312 = sand.u32 %s168, 1
        %s313 = scalar_lea.sflag [#allocation5], %s312
        %s314 = sand.u32 %s168, 1
        %s315 = smul.addr %s314, 128
        %s316 = scalar_lea.vmem [#allocation9], %s315
        %s317 = smul.u32 8, %s27
        %p318 = scmp.lt.s32.totalorder %s28, 0
        %s319 = scalar_select %p318, %s28, 0
        %s320 = scalar_lea.vmem %s2, %s319
        %s321 = smul.u32 16, %s28
        %s322 = smul.u32 8, %s27
        %p323 = scmp.eq.s32.totalorder %s28, 0
        // Predicated region
        $region53: #{tpu_custom_call.1} parent=39 // pred_check
          %p324 = pneg %p323
        $region54: #{tpu_custom_call.1} parent=39 // pred_check_branch
          %326 = sbr.rel (%p324) target = $region56
        $region55: #{tpu_custom_call.1} parent=39 // pred_region
          %327 = vst [vmem:[#allocation2] sm:$0xff] 0.0
          %328 = vst [vmem:[#allocation2 + $0x8] sm:$0xff] 0.0
          %329 = vst [vmem:[#allocation2 + $0x10] sm:$0xff] 0.0
          %330 = vst [vmem:[#allocation2 + $0x18] sm:$0xff] 0.0
          %331 = vst [vmem:[#allocation2 + $0x20] sm:$0xff] 0.0
          %332 = vst [vmem:[#allocation2 + $0x28] sm:$0xff] 0.0
          %333 = vst [vmem:[#allocation2 + $0x30] sm:$0xff] 0.0
          %334 = vst [vmem:[#allocation2 + $0x38] sm:$0xff] 0.0
          %335 = vst [vmem:[#allocation2 + $0x40] sm:$0xff] 0.0
          %336 = vst [vmem:[#allocation2 + $0x48] sm:$0xff] 0.0
          %337 = vst [vmem:[#allocation2 + $0x50] sm:$0xff] 0.0
          %338 = vst [vmem:[#allocation2 + $0x58] sm:$0xff] 0.0
          %339 = vst [vmem:[#allocation2 + $0x60] sm:$0xff] 0.0
          %340 = vst [vmem:[#allocation2 + $0x68] sm:$0xff] 0.0
          %341 = vst [vmem:[#allocation2 + $0x70] sm:$0xff] 0.0
          %342 = vst [vmem:[#allocation2 + $0x78] sm:$0xff] 0.0
        $region56: #{tpu_custom_call.1} parent=39 // pred_fallthru
          _
        %v343 = vld [vmem:[%s276] sm:$0xff]
        %v344 = vld [vmem:[%s276 + $0x8] sm:$0xff]
        %v345 = vld [vmem:[%s276 + $0x10] sm:$0xff]
        %v346 = vld [vmem:[%s276 + $0x18] sm:$0xff]
        %v347 = vld [vmem:[%s276 + $0x20] sm:$0xff]
        %v348 = vld [vmem:[%s276 + $0x28] sm:$0xff]
        %v349 = vld [vmem:[%s276 + $0x30] sm:$0xff]
        %v350 = vld [vmem:[%s276 + $0x38] sm:$0xff]
        %v351 = vld [vmem:[#allocation6] sm:$0xff]
        %v352 = vld [vmem:[#allocation6 + $0x8] sm:$0xff]
        %v353 = vld [vmem:[#allocation6 + $0x10] sm:$0xff]
        %v354 = vld [vmem:[#allocation6 + $0x18] sm:$0xff]
        %v355 = vld [vmem:[#allocation6 + $0x20] sm:$0xff]
        %v356 = vld [vmem:[#allocation6 + $0x28] sm:$0xff]
        %v357 = vld [vmem:[#allocation6 + $0x30] sm:$0xff]
        %v358 = vld [vmem:[#allocation6 + $0x38] sm:$0xff]
        %v359 = vld [vmem:[#allocation6 + $0x40] sm:$0xff]
        %v360 = vld [vmem:[#allocation6 + $0x48] sm:$0xff]
        %v361 = vld [vmem:[#allocation6 + $0x50] sm:$0xff]
        %v362 = vld [vmem:[#allocation6 + $0x58] sm:$0xff]
        %v363 = vld [vmem:[#allocation6 + $0x60] sm:$0xff]
        %v364 = vld [vmem:[#allocation6 + $0x68] sm:$0xff]
        %v365 = vld [vmem:[#allocation6 + $0x70] sm:$0xff]
        %v366 = vld [vmem:[#allocation6 + $0x78] sm:$0xff]
        %v367 = vld [vmem:[%s320] sm:$0x1]
        %v369 = vperm.slane %v367, 0
        %371 = vmatpush.msra.mxu0 %v366
        %372 = vmatpush.msra.mxu0 %v365
        %373 = vmatpush.msra.mxu0 %v364
        %374 = vmatpush.msra.mxu0 %v363
        %375 = vmatpush.msra.mxu0 %v362
        %376 = vmatpush.msra.mxu0 %v361
        %377 = vmatpush.msra.mxu0 %v360
        %378 = vmatpush.msra.mxu0 %v359
        %379 = vmatpush.msra.mxu0 %v358
        %380 = vmatpush.msra.mxu0 %v357
        %381 = vmatpush.msra.mxu0 %v356
        %382 = vmatpush.msra.mxu0 %v355
        %383 = vmatpush.msra.mxu0 %v354
        %384 = vmatpush.msra.mxu0 %v353
        %385 = vmatpush.msra.mxu0 %v352
        %386 = vmatpush.msra.mxu0 %v351
        %387 = vmatmul.f32.gmra.mxu0 %v343
        %v388 = vpop.f32.mrf.mxu0
        %v389 = vadd.f32 %v369, %v388
        %390 = vmatmul.f32.gmra.mxu0 %v344
        %v391 = vpop.f32.mrf.mxu0
        %v392 = vadd.f32 %v369, %v391
        %393 = vmatmul.f32.gmra.mxu0 %v345
        %v394 = vpop.f32.mrf.mxu0
        %v395 = vadd.f32 %v369, %v394
        %396 = vmatmul.f32.gmra.mxu0 %v346
        %v397 = vpop.f32.mrf.mxu0
        %v398 = vadd.f32 %v369, %v397
        %399 = vmatmul.f32.gmra.mxu0 %v347
        %v400 = vpop.f32.mrf.mxu0
        %v401 = vadd.f32 %v369, %v400
        %402 = vmatmul.f32.gmra.mxu0 %v348
        %v403 = vpop.f32.mrf.mxu0
        %v404 = vadd.f32 %v369, %v403
        %405 = vmatmul.f32.gmra.mxu0 %v349
        %v406 = vpop.f32.mrf.mxu0
        %v407 = vadd.f32 %v369, %v406
        %408 = vmatmul.f32.gmra.mxu0 %v350
        %v409 = vpop.f32.mrf.mxu0
        %v410 = vadd.f32 %v369, %v409
        %411 = vdwg.mxu0
        %v412 = vmul.f32 %v389, 0.5
        %v413 = vmul.f32 %v392, 0.5
        %v414 = vmul.f32 %v395, 0.5
        %v415 = vmul.f32 %v398, 0.5
        %v416 = vmul.f32 %v401, 0.5
        %v417 = vmul.f32 %v404, 0.5
        %v418 = vmul.f32 %v407, 0.5
        %v419 = vmul.f32 %v410, 0.5
        %v420 = vmul.f32 %v389, 0.70710677
        %v421 = vmul.f32 %v392, 0.70710677
        %v422 = vmul.f32 %v395, 0.70710677
        %v423 = vmul.f32 %v398, 0.70710677
        %v424 = vmul.f32 %v401, 0.70710677
        %v425 = vmul.f32 %v404, 0.70710677
        %v426 = vmul.f32 %v407, 0.70710677
        %v427 = vmul.f32 %v410, 0.70710677
        %v428 = vmul.f32 %v420, %v420
        %v429 = vmin.f32 16.0, %v428
        %v430 = vmul.f32 %v429, 2.1237322e-06
        %v431 = vadd.f32 %v430, 0.00028619796
        %v432 = vmul.f32 %v429, %v431
        %v433 = vadd.f32 %v432, 0.0036580483
        %v434 = vmul.f32 %v429, %v433
        %v435 = vadd.f32 %v434, 0.05243302
        %v436 = vmul.f32 %v429, %v435
        %v437 = vadd.f32 %v436, 0.18741608
        %v438 = vmul.f32 %v429, %v437
        %v439 = vadd.f32 %v438, 1.1283791
        %v440 = vmul.f32 %v420, %v439
        %v441 = vmul.f32 %v429, 3.8918573e-05
        %v442 = vadd.f32 %v441, 0.001143296
        %v443 = vmul.f32 %v429, %v442
        %v444 = vadd.f32 %v443, 0.014752088
        %v445 = vmul.f32 %v429, %v444
        %v446 = vadd.f32 %v445, 0.112945676
        %v447 = vmul.f32 %v429, %v446
        %v448 = vadd.f32 %v447, 0.4994258
        %v449 = vmul.f32 %v429, %v448
        %v450 = vadd.f32 %v449, 1.0
        %v451 = vrcp.pop %v450
        %v452 = vmul.f32 %v450, %v451
        %v453 = vsub.f32 1.0, %v452
        %v454 = vmul.f32 %v451, %v453
        %v455 = vadd.f32 %v451, %v454
        %vm456 = vweird.f32 %v450
        %vm457 = vweird.f32 %v451
        %vm458 = vmor %vm456, %vm457
        %v459 = vsel %vm458, %v451, %v455
        %v460 = vand.u32 2147483647, %v450
        %vm461 = vcmp.eq.f32.partialorder %v460, 8.507059e+37
        %v462 = vand.u32 %v450, 2147483648
        %v463 = vor.u32 1.1754944e-38, %v462
        %v464 = vsel %vm461, %v463, %v459
        %v465 = vmul.f32 %v440, %v464
        %v466 = vmin.f32 %v465, 1.0
        %v467 = vmax.f32 %v466, -1.0
        %v468 = vmul.f32 %v421, %v421
        %v469 = vmin.f32 16.0, %v468
        %v470 = vmul.f32 %v469, 2.1237322e-06
        %v471 = vadd.f32 %v470, 0.00028619796
        %v472 = vmul.f32 %v469, %v471
        %v473 = vadd.f32 %v472, 0.0036580483
        %v474 = vmul.f32 %v469, %v473
        %v475 = vadd.f32 %v474, 0.05243302
        %v476 = vmul.f32 %v469, %v475
        %v477 = vadd.f32 %v476, 0.18741608
        %v478 = vmul.f32 %v469, %v477
        %v479 = vadd.f32 %v478, 1.1283791
        %v480 = vmul.f32 %v421, %v479
        %v481 = vmul.f32 %v469, 3.8918573e-05
        %v482 = vadd.f32 %v481, 0.001143296
        %v483 = vmul.f32 %v469, %v482
        %v484 = vadd.f32 %v483, 0.014752088
        %v485 = vmul.f32 %v469, %v484
        %v486 = vadd.f32 %v485, 0.112945676
        %v487 = vmul.f32 %v469, %v486
        %v488 = vadd.f32 %v487, 0.4994258
        %v489 = vmul.f32 %v469, %v488
        %v490 = vadd.f32 %v489, 1.0
        %v491 = vrcp.pop %v490
        %v492 = vmul.f32 %v490, %v491
        %v493 = vsub.f32 1.0, %v492
        %v494 = vmul.f32 %v491, %v493
        %v495 = vadd.f32 %v491, %v494
        %vm496 = vweird.f32 %v490
        %vm497 = vweird.f32 %v491
        %vm498 = vmor %vm496, %vm497
        %v499 = vsel %vm498, %v491, %v495
        %v500 = vand.u32 2147483647, %v490
        %vm501 = vcmp.eq.f32.partialorder %v500, 8.507059e+37
        %v502 = vand.u32 %v490, 2147483648
        %v503 = vor.u32 1.1754944e-38, %v502
        %v504 = vsel %vm501, %v503, %v499
        %v505 = vmul.f32 %v480, %v504
        %v506 = vmin.f32 %v505, 1.0
        %v507 = vmax.f32 %v506, -1.0
        %v508 = vmul.f32 %v422, %v422
        %v509 = vmin.f32 16.0, %v508
        %v510 = vmul.f32 %v509, 2.1237322e-06
        %v511 = vadd.f32 %v510, 0.00028619796
        %v512 = vmul.f32 %v509, %v511
        %v513 = vadd.f32 %v512, 0.0036580483
        %v514 = vmul.f32 %v509, %v513
        %v515 = vadd.f32 %v514, 0.05243302
        %v516 = vmul.f32 %v509, %v515
        %v517 = vadd.f32 %v516, 0.18741608
        %v518 = vmul.f32 %v509, %v517
        %v519 = vadd.f32 %v518, 1.1283791
        %v520 = vmul.f32 %v422, %v519
        %v521 = vmul.f32 %v509, 3.8918573e-05
        %v522 = vadd.f32 %v521, 0.001143296
        %v523 = vmul.f32 %v509, %v522
        %v524 = vadd.f32 %v523, 0.014752088
        %v525 = vmul.f32 %v509, %v524
        %v526 = vadd.f32 %v525, 0.112945676
        %v527 = vmul.f32 %v509, %v526
        %v528 = vadd.f32 %v527, 0.4994258
        %v529 = vmul.f32 %v509, %v528
        %v530 = vadd.f32 %v529, 1.0
        %v531 = vrcp.pop %v530
        %v532 = vmul.f32 %v530, %v531
        %v533 = vsub.f32 1.0, %v532
        %v534 = vmul.f32 %v531, %v533
        %v535 = vadd.f32 %v531, %v534
        %vm536 = vweird.f32 %v530
        %vm537 = vweird.f32 %v531
        %vm538 = vmor %vm536, %vm537
        %v539 = vsel %vm538, %v531, %v535
        %v540 = vand.u32 2147483647, %v530
        %vm541 = vcmp.eq.f32.partialorder %v540, 8.507059e+37
        %v542 = vand.u32 %v530, 2147483648
        %v543 = vor.u32 1.1754944e-38, %v542
        %v544 = vsel %vm541, %v543, %v539
        %v545 = vmul.f32 %v520, %v544
        %v546 = vmin.f32 %v545, 1.0
        %v547 = vmax.f32 %v546, -1.0
        %v548 = vmul.f32 %v423, %v423
        %v549 = vmin.f32 16.0, %v548
        %v550 = vmul.f32 %v549, 2.1237322e-06
        %v551 = vadd.f32 %v550, 0.00028619796
        %v552 = vmul.f32 %v549, %v551
        %v553 = vadd.f32 %v552, 0.0036580483
        %v554 = vmul.f32 %v549, %v553
        %v555 = vadd.f32 %v554, 0.05243302
        %v556 = vmul.f32 %v549, %v555
        %v557 = vadd.f32 %v556, 0.18741608
        %v558 = vmul.f32 %v549, %v557
        %v559 = vadd.f32 %v558, 1.1283791
        %v560 = vmul.f32 %v423, %v559
        %v561 = vmul.f32 %v549, 3.8918573e-05
        %v562 = vadd.f32 %v561, 0.001143296
        %v563 = vmul.f32 %v549, %v562
        %v564 = vadd.f32 %v563, 0.014752088
        %v565 = vmul.f32 %v549, %v564
        %v566 = vadd.f32 %v565, 0.112945676
        %v567 = vmul.f32 %v549, %v566
        %v568 = vadd.f32 %v567, 0.4994258
        %v569 = vmul.f32 %v549, %v568
        %v570 = vadd.f32 %v569, 1.0
        %v571 = vrcp.pop %v570
        %v572 = vmul.f32 %v570, %v571
        %v573 = vsub.f32 1.0, %v572
        %v574 = vmul.f32 %v571, %v573
        %v575 = vadd.f32 %v571, %v574
        %vm576 = vweird.f32 %v570
        %vm577 = vweird.f32 %v571
        %vm578 = vmor %vm576, %vm577
        %v579 = vsel %vm578, %v571, %v575
        %v580 = vand.u32 2147483647, %v570
        %vm581 = vcmp.eq.f32.partialorder %v580, 8.507059e+37
        %v582 = vand.u32 %v570, 2147483648
        %v583 = vor.u32 1.1754944e-38, %v582
        %v584 = vsel %vm581, %v583, %v579
        %v585 = vmul.f32 %v560, %v584
        %v586 = vmin.f32 %v585, 1.0
        %v587 = vmax.f32 %v586, -1.0
        %v588 = vmul.f32 %v424, %v424
        %v589 = vmin.f32 16.0, %v588
        %v590 = vmul.f32 %v589, 2.1237322e-06
        %v591 = vadd.f32 %v590, 0.00028619796
        %v592 = vmul.f32 %v589, %v591
        %v593 = vadd.f32 %v592, 0.0036580483
        %v594 = vmul.f32 %v589, %v593
        %v595 = vadd.f32 %v594, 0.05243302
        %v596 = vmul.f32 %v589, %v595
        %v597 = vadd.f32 %v596, 0.18741608
        %v598 = vmul.f32 %v589, %v597
        %v599 = vadd.f32 %v598, 1.1283791
        %v600 = vmul.f32 %v424, %v599
        %v601 = vmul.f32 %v589, 3.8918573e-05
        %v602 = vadd.f32 %v601, 0.001143296
        %v603 = vmul.f32 %v589, %v602
        %v604 = vadd.f32 %v603, 0.014752088
        %v605 = vmul.f32 %v589, %v604
        %v606 = vadd.f32 %v605, 0.112945676
        %v607 = vmul.f32 %v589, %v606
        %v608 = vadd.f32 %v607, 0.4994258
        %v609 = vmul.f32 %v589, %v608
        %v610 = vadd.f32 %v609, 1.0
        %v611 = vrcp.pop %v610
        %v612 = vmul.f32 %v610, %v611
        %v613 = vsub.f32 1.0, %v612
        %v614 = vmul.f32 %v611, %v613
        %v615 = vadd.f32 %v611, %v614
        %vm616 = vweird.f32 %v610
        %vm617 = vweird.f32 %v611
        %vm618 = vmor %vm616, %vm617
        %v619 = vsel %vm618, %v611, %v615
        %v620 = vand.u32 2147483647, %v610
        %vm621 = vcmp.eq.f32.partialorder %v620, 8.507059e+37
        %v622 = vand.u32 %v610, 2147483648
        %v623 = vor.u32 1.1754944e-38, %v622
        %v624 = vsel %vm621, %v623, %v619
        %v625 = vmul.f32 %v600, %v624
        %v626 = vmin.f32 %v625, 1.0
        %v627 = vmax.f32 %v626, -1.0
        %v628 = vmul.f32 %v425, %v425
        %v629 = vmin.f32 16.0, %v628
        %v630 = vmul.f32 %v629, 2.1237322e-06
        %v631 = vadd.f32 %v630, 0.00028619796
        %v632 = vmul.f32 %v629, %v631
        %v633 = vadd.f32 %v632, 0.0036580483
        %v634 = vmul.f32 %v629, %v633
        %v635 = vadd.f32 %v634, 0.05243302
        %v636 = vmul.f32 %v629, %v635
        %v637 = vadd.f32 %v636, 0.18741608
        %v638 = vmul.f32 %v629, %v637
        %v639 = vadd.f32 %v638, 1.1283791
        %v640 = vmul.f32 %v425, %v639
        %v641 = vmul.f32 %v629, 3.8918573e-05
        %v642 = vadd.f32 %v641, 0.001143296
        %v643 = vmul.f32 %v629, %v642
        %v644 = vadd.f32 %v643, 0.014752088
        %v645 = vmul.f32 %v629, %v644
        %v646 = vadd.f32 %v645, 0.112945676
        %v647 = vmul.f32 %v629, %v646
        %v648 = vadd.f32 %v647, 0.4994258
        %v649 = vmul.f32 %v629, %v648
        %v650 = vadd.f32 %v649, 1.0
        %v651 = vrcp.pop %v650
        %v652 = vmul.f32 %v650, %v651
        %v653 = vsub.f32 1.0, %v652
        %v654 = vmul.f32 %v651, %v653
        %v655 = vadd.f32 %v651, %v654
        %vm656 = vweird.f32 %v650
        %vm657 = vweird.f32 %v651
        %vm658 = vmor %vm656, %vm657
        %v659 = vsel %vm658, %v651, %v655
        %v660 = vand.u32 2147483647, %v650
        %vm661 = vcmp.eq.f32.partialorder %v660, 8.507059e+37
        %v662 = vand.u32 %v650, 2147483648
        %v663 = vor.u32 1.1754944e-38, %v662
        %v664 = vsel %vm661, %v663, %v659
        %v665 = vmul.f32 %v640, %v664
        %v666 = vmin.f32 %v665, 1.0
        %v667 = vmax.f32 %v666, -1.0
        %v668 = vmul.f32 %v426, %v426
        %v669 = vmin.f32 16.0, %v668
        %v670 = vmul.f32 %v669, 2.1237322e-06
        %v671 = vadd.f32 %v670, 0.00028619796
        %v672 = vmul.f32 %v669, %v671
        %v673 = vadd.f32 %v672, 0.0036580483
        %v674 = vmul.f32 %v669, %v673
        %v675 = vadd.f32 %v674, 0.05243302
        %v676 = vmul.f32 %v669, %v675
        %v677 = vadd.f32 %v676, 0.18741608
        %v678 = vmul.f32 %v669, %v677
        %v679 = vadd.f32 %v678, 1.1283791
        %v680 = vmul.f32 %v426, %v679
        %v681 = vmul.f32 %v669, 3.8918573e-05
        %v682 = vadd.f32 %v681, 0.001143296
        %v683 = vmul.f32 %v669, %v682
        %v684 = vadd.f32 %v683, 0.014752088
        %v685 = vmul.f32 %v669, %v684
        %v686 = vadd.f32 %v685, 0.112945676
        %v687 = vmul.f32 %v669, %v686
        %v688 = vadd.f32 %v687, 0.4994258
        %v689 = vmul.f32 %v669, %v688
        %v690 = vadd.f32 %v689, 1.0
        %v691 = vrcp.pop %v690
        %v692 = vmul.f32 %v690, %v691
        %v693 = vsub.f32 1.0, %v692
        %v694 = vmul.f32 %v691, %v693
        %v695 = vadd.f32 %v691, %v694
        %vm696 = vweird.f32 %v690
        %vm697 = vweird.f32 %v691
        %vm698 = vmor %vm696, %vm697
        %v699 = vsel %vm698, %v691, %v695
        %v700 = vand.u32 2147483647, %v690
        %vm701 = vcmp.eq.f32.partialorder %v700, 8.507059e+37
        %v702 = vand.u32 %v690, 2147483648
        %v703 = vor.u32 1.1754944e-38, %v702
        %v704 = vsel %vm701, %v703, %v699
        %v705 = vmul.f32 %v680, %v704
        %v706 = vmin.f32 %v705, 1.0
        %v707 = vmax.f32 %v706, -1.0
        %v708 = vmul.f32 %v427, %v427
        %v709 = vmin.f32 16.0, %v708
        %v710 = vmul.f32 %v709, 2.1237322e-06
        %v711 = vadd.f32 %v710, 0.00028619796
        %v712 = vmul.f32 %v709, %v711
        %v713 = vadd.f32 %v712, 0.0036580483
        %v714 = vmul.f32 %v709, %v713
        %v715 = vadd.f32 %v714, 0.05243302
        %v716 = vmul.f32 %v709, %v715
        %v717 = vadd.f32 %v716, 0.18741608
        %v718 = vmul.f32 %v709, %v717
        %v719 = vadd.f32 %v718, 1.1283791
        %v720 = vmul.f32 %v427, %v719
        %v721 = vmul.f32 %v709, 3.8918573e-05
        %v722 = vadd.f32 %v721, 0.001143296
        %v723 = vmul.f32 %v709, %v722
        %v724 = vadd.f32 %v723, 0.014752088
        %v725 = vmul.f32 %v709, %v724
        %v726 = vadd.f32 %v725, 0.112945676
        %v727 = vmul.f32 %v709, %v726
        %v728 = vadd.f32 %v727, 0.4994258
        %v729 = vmul.f32 %v709, %v728
        %v730 = vadd.f32 %v729, 1.0
        %v731 = vrcp.pop %v730
        %v732 = vmul.f32 %v730, %v731
        %v733 = vsub.f32 1.0, %v732
        %v734 = vmul.f32 %v731, %v733
        %v735 = vadd.f32 %v731, %v734
        %vm736 = vweird.f32 %v730
        %vm737 = vweird.f32 %v731
        %vm738 = vmor %vm736, %vm737
        %v739 = vsel %vm738, %v731, %v735
        %v740 = vand.u32 2147483647, %v730
        %vm741 = vcmp.eq.f32.partialorder %v740, 8.507059e+37
        %v742 = vand.u32 %v730, 2147483648
        %v743 = vor.u32 1.1754944e-38, %v742
        %v744 = vsel %vm741, %v743, %v739
        %v745 = vmul.f32 %v720, %v744
        %v746 = vmin.f32 %v745, 1.0
        %v747 = vmax.f32 %v746, -1.0
        %v748 = vadd.f32 %v467, 1.0
        %v749 = vadd.f32 %v507, 1.0
        %v750 = vadd.f32 %v547, 1.0
        %v751 = vadd.f32 %v587, 1.0
        %v752 = vadd.f32 %v627, 1.0
        %v753 = vadd.f32 %v667, 1.0
        %v754 = vadd.f32 %v707, 1.0
        %v755 = vadd.f32 %v747, 1.0
        %v756 = vmul.f32 %v412, %v748
        %v757 = vmul.f32 %v413, %v749
        %v758 = vmul.f32 %v414, %v750
        %v759 = vmul.f32 %v415, %v751
        %v760 = vmul.f32 %v416, %v752
        %v761 = vmul.f32 %v417, %v753
        %v762 = vmul.f32 %v418, %v754
        %v763 = vmul.f32 %v419, %v755
        %v764 = vld [vmem:[#allocation2] sm:$0xff]
        %v765 = vld [vmem:[#allocation2 + $0x8] sm:$0xff]
        %v766 = vld [vmem:[#allocation2 + $0x10] sm:$0xff]
        %v767 = vld [vmem:[#allocation2 + $0x18] sm:$0xff]
        %v768 = vld [vmem:[#allocation2 + $0x20] sm:$0xff]
        %v769 = vld [vmem:[#allocation2 + $0x28] sm:$0xff]
        %v770 = vld [vmem:[#allocation2 + $0x30] sm:$0xff]
        %v771 = vld [vmem:[#allocation2 + $0x38] sm:$0xff]
        %v772 = vld [vmem:[#allocation2 + $0x40] sm:$0xff]
        %v773 = vld [vmem:[#allocation2 + $0x48] sm:$0xff]
        %v774 = vld [vmem:[#allocation2 + $0x50] sm:$0xff]
        %v775 = vld [vmem:[#allocation2 + $0x58] sm:$0xff]
        %v776 = vld [vmem:[#allocation2 + $0x60] sm:$0xff]
        %v777 = vld [vmem:[#allocation2 + $0x68] sm:$0xff]
        %v778 = vld [vmem:[#allocation2 + $0x70] sm:$0xff]
        %v779 = vld [vmem:[#allocation2 + $0x78] sm:$0xff]
        %v780 = vld [vmem:[#allocation8] sm:$0xff]
        %v781 = vld [vmem:[#allocation8 + $0x8] sm:$0xff]
        %v782 = vld [vmem:[#allocation8 + $0x10] sm:$0xff]
        %v783 = vld [vmem:[#allocation8 + $0x18] sm:$0xff]
        %v784 = vld [vmem:[#allocation8 + $0x20] sm:$0xff]
        %v785 = vld [vmem:[#allocation8 + $0x28] sm:$0xff]
        %v786 = vld [vmem:[#allocation8 + $0x30] sm:$0xff]
        %v787 = vld [vmem:[#allocation8 + $0x38] sm:$0xff]
        %v788 = vld [vmem:[#allocation8 + $0x40] sm:$0xff]
        %v789 = vld [vmem:[#allocation8 + $0x48] sm:$0xff]
        %v790 = vld [vmem:[#allocation8 + $0x50] sm:$0xff]
        %v791 = vld [vmem:[#allocation8 + $0x58] sm:$0xff]
        %v792 = vld [vmem:[#allocation8 + $0x60] sm:$0xff]
        %v793 = vld [vmem:[#allocation8 + $0x68] sm:$0xff]
        %v794 = vld [vmem:[#allocation8 + $0x70] sm:$0xff]
        %v795 = vld [vmem:[#allocation8 + $0x78] sm:$0xff]
        %v796 = vld [vmem:[#allocation8 + $0x80] sm:$0xff]
        %v797 = vld [vmem:[#allocation8 + $0x88] sm:$0xff]
        %v798 = vld [vmem:[#allocation8 + $0x90] sm:$0xff]
        %v799 = vld [vmem:[#allocation8 + $0x98] sm:$0xff]
        %v800 = vld [vmem:[#allocation8 + $0xa0] sm:$0xff]
        %v801 = vld [vmem:[#allocation8 + $0xa8] sm:$0xff]
        %v802 = vld [vmem:[#allocation8 + $0xb0] sm:$0xff]
        %v803 = vld [vmem:[#allocation8 + $0xb8] sm:$0xff]
        %v804 = vld [vmem:[#allocation8 + $0xc0] sm:$0xff]
        %v805 = vld [vmem:[#allocation8 + $0xc8] sm:$0xff]
        %v806 = vld [vmem:[#allocation8 + $0xd0] sm:$0xff]
        %v807 = vld [vmem:[#allocation8 + $0xd8] sm:$0xff]
        %v808 = vld [vmem:[#allocation8 + $0xe0] sm:$0xff]
        %v809 = vld [vmem:[#allocation8 + $0xe8] sm:$0xff]
        %v810 = vld [vmem:[#allocation8 + $0xf0] sm:$0xff]
        %v811 = vld [vmem:[#allocation8 + $0xf8] sm:$0xff]
        %812 = vmatpush.msra.mxu0 %v810
        %813 = vmatpush.msra.mxu0 %v808
        %814 = vmatpush.msra.mxu0 %v806
        %815 = vmatpush.msra.mxu0 %v804
        %816 = vmatpush.msra.mxu0 %v802
        %817 = vmatpush.msra.mxu0 %v800
        %818 = vmatpush.msra.mxu0 %v798
        %819 = vmatpush.msra.mxu0 %v796
        %820 = vmatpush.msra.mxu0 %v794
        %821 = vmatpush.msra.mxu0 %v792
        %822 = vmatpush.msra.mxu0 %v790
        %823 = vmatpush.msra.mxu0 %v788
        %824 = vmatpush.msra.mxu0 %v786
        %825 = vmatpush.msra.mxu0 %v784
        %826 = vmatpush.msra.mxu0 %v782
        %827 = vmatpush.msra.mxu0 %v780
        %828 = vmatmul.f32.gmra.mxu0 %v756
        %v829 = vpop.f32.mrf.mxu0
        %v830 = vadd.f32 0.0, %v829
        %831 = vmatmul.f32.gmra.mxu0 %v757
        %v832 = vpop.f32.mrf.mxu0
        %v833 = vadd.f32 0.0, %v832
        %834 = vmatmul.f32.gmra.mxu0 %v758
        %v835 = vpop.f32.mrf.mxu0
        %v836 = vadd.f32 0.0, %v835
        %837 = vmatmul.f32.gmra.mxu0 %v759
        %v838 = vpop.f32.mrf.mxu0
        %v839 = vadd.f32 0.0, %v838
        %840 = vmatmul.f32.gmra.mxu0 %v760
        %v841 = vpop.f32.mrf.mxu0
        %v842 = vadd.f32 0.0, %v841
        %843 = vmatmul.f32.gmra.mxu0 %v761
        %v844 = vpop.f32.mrf.mxu0
        %v845 = vadd.f32 0.0, %v844
        %846 = vmatmul.f32.gmra.mxu0 %v762
        %v847 = vpop.f32.mrf.mxu0
        %v848 = vadd.f32 0.0, %v847
        %849 = vmatmul.f32.gmra.mxu0 %v763
        %v850 = vpop.f32.mrf.mxu0
        %v851 = vadd.f32 0.0, %v850
        %852 = vdwg.mxu0
        %853 = vmatpush.msra.mxu0 %v811
        %854 = vmatpush.msra.mxu0 %v809
        %855 = vmatpush.msra.mxu0 %v807
        %856 = vmatpush.msra.mxu0 %v805
        %857 = vmatpush.msra.mxu0 %v803
        %858 = vmatpush.msra.mxu0 %v801
        %859 = vmatpush.msra.mxu0 %v799
        %860 = vmatpush.msra.mxu0 %v797
        %861 = vmatpush.msra.mxu0 %v795
        %862 = vmatpush.msra.mxu0 %v793
        %863 = vmatpush.msra.mxu0 %v791
        %864 = vmatpush.msra.mxu0 %v789
        %865 = vmatpush.msra.mxu0 %v787
        %866 = vmatpush.msra.mxu0 %v785
        %867 = vmatpush.msra.mxu0 %v783
        %868 = vmatpush.msra.mxu0 %v781
        %869 = vmatmul.f32.gmra.mxu0 %v756
        %v870 = vpop.f32.mrf.mxu0
        %v871 = vadd.f32 0.0, %v870
        %872 = vmatmul.f32.gmra.mxu0 %v757
        %v873 = vpop.f32.mrf.mxu0
        %v874 = vadd.f32 0.0, %v873
        %875 = vmatmul.f32.gmra.mxu0 %v758
        %v876 = vpop.f32.mrf.mxu0
        %v877 = vadd.f32 0.0, %v876
        %878 = vmatmul.f32.gmra.mxu0 %v759
        %v879 = vpop.f32.mrf.mxu0
        %v880 = vadd.f32 0.0, %v879
        %881 = vmatmul.f32.gmra.mxu0 %v760
        %v882 = vpop.f32.mrf.mxu0
        %v883 = vadd.f32 0.0, %v882
        %884 = vmatmul.f32.gmra.mxu0 %v761
        %v885 = vpop.f32.mrf.mxu0
        %v886 = vadd.f32 0.0, %v885
        %887 = vmatmul.f32.gmra.mxu0 %v762
        %v888 = vpop.f32.mrf.mxu0
        %v889 = vadd.f32 0.0, %v888
        %890 = vmatmul.f32.gmra.mxu0 %v763
        %v891 = vpop.f32.mrf.mxu0
        %v892 = vadd.f32 0.0, %v891
        %893 = vdwg.mxu0
        %v894 = vadd.f32 %v764, %v830
        %v895 = vadd.f32 %v765, %v871
        %v896 = vadd.f32 %v766, %v833
        %v897 = vadd.f32 %v767, %v874
        %v898 = vadd.f32 %v768, %v836
        %v899 = vadd.f32 %v769, %v877
        %v900 = vadd.f32 %v770, %v839
        %v901 = vadd.f32 %v771, %v880
        %v902 = vadd.f32 %v772, %v842
        %v903 = vadd.f32 %v773, %v883
        %v904 = vadd.f32 %v774, %v845
        %v905 = vadd.f32 %v775, %v886
        %v906 = vadd.f32 %v776, %v848
        %v907 = vadd.f32 %v777, %v889
        %v908 = vadd.f32 %v778, %v851
        %v909 = vadd.f32 %v779, %v892
        %910 = vst [vmem:[#allocation2] sm:$0xff] %v894
        %911 = vst [vmem:[#allocation2 + $0x8] sm:$0xff] %v895
        %912 = vst [vmem:[#allocation2 + $0x10] sm:$0xff] %v896
        %913 = vst [vmem:[#allocation2 + $0x18] sm:$0xff] %v897
        %914 = vst [vmem:[#allocation2 + $0x20] sm:$0xff] %v898
        %915 = vst [vmem:[#allocation2 + $0x28] sm:$0xff] %v899
        %916 = vst [vmem:[#allocation2 + $0x30] sm:$0xff] %v900
        %917 = vst [vmem:[#allocation2 + $0x38] sm:$0xff] %v901
        %918 = vst [vmem:[#allocation2 + $0x40] sm:$0xff] %v902
        %919 = vst [vmem:[#allocation2 + $0x48] sm:$0xff] %v903
        %920 = vst [vmem:[#allocation2 + $0x50] sm:$0xff] %v904
        %921 = vst [vmem:[#allocation2 + $0x58] sm:$0xff] %v905
        %922 = vst [vmem:[#allocation2 + $0x60] sm:$0xff] %v906
        %923 = vst [vmem:[#allocation2 + $0x68] sm:$0xff] %v907
        %924 = vst [vmem:[#allocation2 + $0x70] sm:$0xff] %v908
        %925 = vst [vmem:[#allocation2 + $0x78] sm:$0xff] %v909
        // Predicated region
        $region57: #{tpu_custom_call.1} parent=39 // pred_check
          %p926 = pneg %p323
        $region58: #{tpu_custom_call.1} parent=39 // pred_check_branch
          %928 = sbr.rel (%p926) target = $region60
        $region59: #{tpu_custom_call.1} parent=39 // pred_region
          %v929 = vld [vmem:[#allocation2] sm:$0xff]
          %v930 = vld [vmem:[#allocation2 + $0x8] sm:$0xff]
          %v931 = vld [vmem:[#allocation2 + $0x10] sm:$0xff]
          %v932 = vld [vmem:[#allocation2 + $0x18] sm:$0xff]
          %v933 = vld [vmem:[#allocation2 + $0x20] sm:$0xff]
          %v934 = vld [vmem:[#allocation2 + $0x28] sm:$0xff]
          %v935 = vld [vmem:[#allocation2 + $0x30] sm:$0xff]
          %v936 = vld [vmem:[#allocation2 + $0x38] sm:$0xff]
          %v937 = vld [vmem:[#allocation2 + $0x40] sm:$0xff]
          %v938 = vld [vmem:[#allocation2 + $0x48] sm:$0xff]
          %v939 = vld [vmem:[#allocation2 + $0x50] sm:$0xff]
          %v940 = vld [vmem:[#allocation2 + $0x58] sm:$0xff]
          %v941 = vld [vmem:[#allocation2 + $0x60] sm:$0xff]
          %v942 = vld [vmem:[#allocation2 + $0x68] sm:$0xff]
          %v943 = vld [vmem:[#allocation2 + $0x70] sm:$0xff]
          %v944 = vld [vmem:[#allocation2 + $0x78] sm:$0xff]
          %v945 = vld [vmem:[%s4] sm:$0x3]
          %v947 = vperm.slane %v945, 0
          %v948 = vperm.slane %v945, 1
          %v951 = vadd.f32 %v929, %v947
          %v952 = vadd.f32 %v930, %v948
          %v953 = vadd.f32 %v931, %v947
          %v954 = vadd.f32 %v932, %v948
          %v955 = vadd.f32 %v933, %v947
          %v956 = vadd.f32 %v934, %v948
          %v957 = vadd.f32 %v935, %v947
          %v958 = vadd.f32 %v936, %v948
          %v959 = vadd.f32 %v937, %v947
          %v960 = vadd.f32 %v938, %v948
          %v961 = vadd.f32 %v939, %v947
          %v962 = vadd.f32 %v940, %v948
          %v963 = vadd.f32 %v941, %v947
          %v964 = vadd.f32 %v942, %v948
          %v965 = vadd.f32 %v943, %v947
          %v966 = vadd.f32 %v944, %v948
          %967 = vst [vmem:[%s316] sm:$0xff] %v951
          %968 = vst [vmem:[%s316 + $0x8] sm:$0xff] %v952
          %969 = vst [vmem:[%s316 + $0x10] sm:$0xff] %v953
          %970 = vst [vmem:[%s316 + $0x18] sm:$0xff] %v954
          %971 = vst [vmem:[%s316 + $0x20] sm:$0xff] %v955
          %972 = vst [vmem:[%s316 + $0x28] sm:$0xff] %v956
          %973 = vst [vmem:[%s316 + $0x30] sm:$0xff] %v957
          %974 = vst [vmem:[%s316 + $0x38] sm:$0xff] %v958
          %975 = vst [vmem:[%s316 + $0x40] sm:$0xff] %v959
          %976 = vst [vmem:[%s316 + $0x48] sm:$0xff] %v960
          %977 = vst [vmem:[%s316 + $0x50] sm:$0xff] %v961
          %978 = vst [vmem:[%s316 + $0x58] sm:$0xff] %v962
          %979 = vst [vmem:[%s316 + $0x60] sm:$0xff] %v963
          %980 = vst [vmem:[%s316 + $0x68] sm:$0xff] %v964
          %981 = vst [vmem:[%s316 + $0x70] sm:$0xff] %v965
          %982 = vst [vmem:[%s316 + $0x78] sm:$0xff] %v966
        $region60: #{tpu_custom_call.1} parent=39 // pred_fallthru
          _
        %s983 = sand.u32 %s168, 1
        %s984 = scalar_lea.sflag [#allocation5], %s983
        %s985 = sand.u32 %s168, 1
        %s986 = smul.addr %s985, 128
        %s987 = scalar_lea.vmem [#allocation9], %s986
        // Predicated region
        $region61: #{tpu_custom_call.1} parent=39 // pred_check
          %p988 = pneg %p178
        $region62: #{tpu_custom_call.1} parent=39 // pred_check_branch
          %990 = sbr.rel (%p988) target = $region64
        $region63: #{tpu_custom_call.1} parent=39 // pred_region
          %s991 = smul.u32 8, %s27
          %993 = vsyncadd %s984, 0
          %s994 = smul.addr %s991, 2
          %s995 = smul.addr %s994, 8
          %s996 = scalar_lea.hbm %s5, %s995
          %s997 = sshll.u32 %s987, 4
          %s998 = int_to_ptr.vmem [resolvable:$true] %s997
          %s999 = sshll.u32 %s996, 4
          %s1000 = int_to_ptr.hbm [resolvable:$true] %s999
          %1005 = dma.vmem_to_hbm [thread:$0]  %s998, 2048, %s1000, %s984, 256, 256, 16
        $region64: #{tpu_custom_call.1} parent=39 // pred_fallthru
          _
      $region40: #{tpu_custom_call.1} parent=5 // pred_fallthru
        _
      %p1006 = scmp.le.s32.totalorder 2, %s18
      // Predicated region
      $region65: #{tpu_custom_call.1} parent=5 // pred_check
        %p1007 = pneg %p1006
      $region66: #{tpu_custom_call.1} parent=5 // pred_check_branch
        %1009 = sbr.rel (%p1007) target = $region68
      $region67: #{tpu_custom_call.1} parent=5 // pred_region
        %s1010 = ssub.s32 %s18, 2
        // Predicated region
        $region69: #{tpu_custom_call.1} parent=67 // pred_check
          %p1011 = pneg %p184
        $region70: #{tpu_custom_call.1} parent=67 // pred_check_branch
          %1013 = sbr.rel (%p1011) target = $region72
        $region71: #{tpu_custom_call.1} parent=67 // pred_region
          %s1014 = sand.u32 %s169, 1
          %s1015 = scalar_lea.sflag [#allocation5], %s1014
          %s1016 = sand.u32 %s169, 1
          %s1017 = smul.addr %s1016, 128
          %s1018 = scalar_lea.vmem [#allocation9], %s1017
          %1020 = dma.done %s1015, 2048
        $region72: #{tpu_custom_call.1} parent=67 // pred_fallthru
          _
      $region68: #{tpu_custom_call.1} parent=5 // pred_fallthru
        _
    $region6: #{tpu_custom_call.1} parent=1 // loop_footer
      %s22 = sadd.s32 1, %s18
    $region7: #{tpu_custom_call.1} parent=1 // loop_footer_branch
      %17 = sbr.rel target = $region3
    $region8: #{tpu_custom_call.1} parent=1 // loop_exit
      _
    %1021 = vsyncpa [#allocation4], 1
    %s1022 = scalar_lea.sflag [#allocation4], 1
    %1023 = vsyncpa %s1022, 1
    %1024 = vsyncpa [#allocation7], 1
    %1025 = vsyncpa [#allocation5], 1
    %s1026 = scalar_lea.sflag [#allocation5], 1
    %1027 = vsyncpa %s1026, 1

</llo_original>
